<compile_context>
chip_gen: v6e
topology: v6e:2x2x1
jax: 0.10.0
libtpu: 0.0.40
codegen_flags: <defaults>
</compile_context>

<pallas_src>
import functools
import math

import jax
import jax.numpy as jnp
from jax.experimental import pallas as pl
from jax.experimental.pallas import tpu as pltpu


_ACTIVATIONS = {
    "relu": lambda h: jnp.maximum(h, 0.0),
    "silu": jax.nn.silu,
    "gelu": jax.nn.gelu,
    "tanh": jnp.tanh,
    "sigmoid": jax.nn.sigmoid,
}


def _ff_kernel(*refs, has_mask, activation):
    """Fused: mask-fill + nan-fill + Linear1 + act + Linear2 on one row tile."""
    if has_mask:
        x_ref, m_ref, w1_ref, b1_ref, w2_ref, b2_ref, o_ref = refs
    else:
        x_ref, w1_ref, b1_ref, w2_ref, b2_ref, o_ref = refs

    x = x_ref[...]
    if has_mask:
        keep = (m_ref[...] != 0) & (~jnp.isnan(x))   # single fused select
    else:
        keep = ~jnp.isnan(x)
    x = jnp.where(keep, x, jnp.zeros_like(x))

    # _emb: Linear(in_dim -> dim)   (block-diagonal lane-packed weights)
    h = jnp.dot(x, w1_ref[...], preferred_element_type=jnp.float32) + b1_ref[...]
    h = _ACTIVATIONS[activation](h)
    # _net: Linear(dim -> out_dim)
    y = jnp.dot(h, w2_ref[...], preferred_element_type=jnp.float32) + b2_ref[...]
    o_ref[...] = y.astype(o_ref.dtype)


def feedforward_pallas(x, mask, w1, b1, w2, b2, in_dim, *,
                       block_rows=8192, activation="relu"):
    """x: [..., feat] with feat <= in_dim; mask broadcastable to x or None.

    w1: [in_dim, dim], b1: [1, dim], w2: [dim, out_dim], b2: [1, out_dim].
    # TODO(synk): n_hid > 1 (more than one hidden Linear) is not fused here;
    # the module default (n_hid=1) is implemented.
    """
    orig_shape = x.shape
    feat = orig_shape[-1]
    assert feat <= in_dim, "pad_to_dim only pads up"
    dim = w1.shape[1]
    out_dim = w2.shape[1]

    n = 1
    for d in orig_shape[:-1]:
        n *= int(d)

    has_mask = mask is not None
    if has_mask:
        if mask.shape != x.shape:
            # TODO(synk): stream compact (per-row / per-token) masks with their
            # own BlockSpec instead of materializing a broadcast copy.
            mask = jnp.broadcast_to(mask, x.shape)
        mask = (mask != 0).astype(jnp.int8)          # byte traffic /4 vs f32

    # pad_to_dim: use only the first `feat` rows of w1 (padded cols are zero).
    w1_live = w1[:feat, :]

    # Lane packing: pack p logical rows into one 128-lane vreg row via
    # block-diagonal weights kron(I_p, W).  p is chosen from the dims only,
    # and rows are padded so p is always achieved (lane-dense stores).
    widest = max(feat, dim, out_dim, 1)
    p = 1
    while 2 * p * widest <= 128:
        p *= 2

    n_pad = (-n) % p
    x2 = x.reshape(n, feat)
    m2 = mask.reshape(n, feat) if has_mask else None
    if n_pad:
        x2 = jnp.concatenate([x2, jnp.zeros((n_pad, feat), x2.dtype)], axis=0)
        if has_mask:
            m2 = jnp.concatenate([m2, jnp.zeros((n_pad, feat), m2.dtype)], axis=0)
    n_tot = n + n_pad
    m_rows = n_tot // p
    x2 = x2.reshape(m_rows, p * feat)
    if has_mask:
        m2 = m2.reshape(m_rows, p * feat)

    # One-time (per call) weight packing.  TODO(synk): hoist / cache per model.
    eye = jnp.eye(p, dtype=w1.dtype)
    w1_blk = jnp.kron(eye, w1_live)                              # [p*feat, p*dim]
    w2_blk = jnp.kron(eye, w2)                                   # [p*dim, p*out_dim]
    b1_blk = jnp.tile(b1.reshape(1, dim), (1, p)).astype(jnp.float32)
    b2_blk = jnp.tile(b2.reshape(1, out_dim), (1, p)).astype(jnp.float32)

    pf, pd, po = p * feat, p * dim, p * out_dim
    x_item = jnp.dtype(x2.dtype).itemsize

    # --- VMEM budget (per grid step) -------------------------------------
    # Streamed operands are double-buffered by the BlockSpec pipeline; the
    # in-kernel f32 temporaries (masked x copy, h, y) are single instances.
    bytes_row_stream = pf * x_item + (pf if has_mask else 0) + po * x_item
    bytes_row_tmp = pf * 4 + pd * 4 + po * 4
    w_bytes = sum(int(a.size) * jnp.dtype(a.dtype).itemsize
                  for a in (w1_blk, b1_blk, w2_blk, b2_blk))

    vmem_phys = 64 << 20                      # conservative default (v7x per-TC)
    try:
        info = pltpu.get_tpu_info()
        vmem_phys = int(getattr(info, "vmem_capacity_bytes", vmem_phys))
    except Exception:
        pass
    vmem_cap = (vmem_phys * 3) // 4           # headroom for Mosaic internals

    def budget(t):
        return 2 * t * bytes_row_stream + t * bytes_row_tmp + 2 * w_bytes

    tm = min(block_rows, m_rows)
    while tm > 32 and budget(tm) > vmem_cap:
        tm //= 2
    if tm < m_rows:
        # int8 mask native tile is (32, 128); keep sublane multiples.
        tm = max(32, (tm // 32) * 32)
    grid = (pl.cdiv(m_rows, tm),)

    need = budget(min(tm, m_rows))
    vmem_limit = int(min(max(need + (4 << 20), 32 << 20), (vmem_phys * 85) // 100))

    # --- specs -------------------------------------------------------------
    x_spec = pl.BlockSpec((tm, pf), lambda i: (i, 0))
    o_spec = pl.BlockSpec((tm, po), lambda i: (i, 0))
    w1_spec = pl.BlockSpec((pf, pd), lambda i: (0, 0))
    b1_spec = pl.BlockSpec((1, pd), lambda i: (0, 0))
    w2_spec = pl.BlockSpec((pd, po), lambda i: (0, 0))
    b2_spec = pl.BlockSpec((1, po), lambda i: (0, 0))

    in_specs = [x_spec]
    args = [x2]
    if has_mask:
        in_specs.append(pl.BlockSpec((tm, pf), lambda i: (i, 0)))
        args.append(m2)
    in_specs += [w1_spec, b1_spec, w2_spec, b2_spec]
    args += [w1_blk, b1_blk, w2_blk, b2_blk]

    cost = pl.CostEstimate(
        flops=int(2 * n_tot * (feat * dim + dim * out_dim)),
        transcendentals=0,
        bytes_accessed=int(n_tot * feat * x_item
                           + (n_tot * feat if has_mask else 0)
                           + n_tot * out_dim * x_item + w_bytes),
    )

    kernel = functools.partial(_ff_kernel, has_mask=has_mask,
                               activation=activation)

    out = pl.pallas_call(
        kernel,
        out_shape=jax.ShapeDtypeStruct((m_rows, po), x.dtype),
        grid=grid,
        in_specs=in_specs,
        out_specs=o_spec,
        compiler_params=pltpu.CompilerParams(
            dimension_semantics=("parallel",),
            vmem_limit_bytes=vmem_limit),
        cost_estimate=cost,
    )(*args)

    out = out.reshape(n_tot, out_dim)
    if n_pad:
        out = out[:n]
    return out.reshape(*orig_shape[:-1], out_dim)


def _ref_forward(x, mask, w1, b1, w2, b2, in_dim):
    """Pure-JAX reference mirroring the PyTorch forward."""
    if mask is not None:
        x = jnp.where(mask == 0, 0.0, x)
    x = jnp.where(jnp.isnan(x), 0.0, x)
    feat = x.shape[-1]
    if feat < in_dim:
        pad = [(0, 0)] * (x.ndim - 1) + [(0, in_dim - feat)]
        x = jnp.pad(x, pad, constant_values=0.0)
    h = jnp.maximum(x @ w1 + b1.reshape(-1), 0.0)
    return h @ w2 + b2.reshape(-1)


if __name__ == "__main__":
    # FeedForward(dim=32) with n_hid=1, relu, bias=True, pad_to_dim=True
    dim = 32
    in_dim = 32
    out_dim = 32
    batch, seq, feat = 2, 8, 24          # feat < in_dim exercises pad_to_dim

    key = jax.random.PRNGKey(0)
    kx, km, k1, k2, k3, k4 = jax.random.split(key, 6)

    x = jax.random.normal(kx, (batch, seq, feat), dtype=jnp.float32)
    x = x.at[0, 0, 0].set(jnp.nan)       # exercise replace_nan_by_zero
    mask = (jax.random.uniform(km, (batch, seq, feat)) > 0.2).astype(jnp.int8)

    # Parameters per nn.Linear, stored transposed (in, out).
    w1 = jax.random.normal(k1, (in_dim, dim), dtype=jnp.float32) * 0.1
    b1 = jax.random.normal(k2, (1, dim), dtype=jnp.float32) * 0.1
    w2 = jax.random.normal(k3, (dim, out_dim), dtype=jnp.float32) * 0.1
    b2 = jax.random.normal(k4, (1, out_dim), dtype=jnp.float32) * 0.1

    # 1) Small shape from the spec (single tile).
    out = feedforward_pallas(x, mask, w1, b1, w2, b2, in_dim)
    out = jax.block_until_ready(out)
    ref = _ref_forward(x, mask, w1, b1, w2, b2, in_dim)
    assert out.shape == (batch, seq, out_dim)
    assert jnp.allclose(out, ref, atol=1e-5, rtol=1e-5), "mismatch vs reference"

    # 2) Multi-tile grid with a partial last tile (exercises the row pipeline
    #    and the lane-pack row padding path: 2*72 rows, pack factor 4).
    kx2, km2 = jax.random.split(kx)
    x_big = jax.random.normal(kx2, (batch, 72, feat), dtype=jnp.float32)
    x_big = x_big.at[1, 3, 5].set(jnp.nan)
    mask_big = (jax.random.uniform(km2, (batch, 72, feat)) > 0.2).astype(jnp.int8)
    out_big = feedforward_pallas(x_big, mask_big, w1, b1, w2, b2, in_dim,
                                 block_rows=8)
    out_big = jax.block_until_ready(out_big)
    ref_big = _ref_forward(x_big, mask_big, w1, b1, w2, b2, in_dim)
    assert jnp.allclose(out_big, ref_big, atol=1e-5, rtol=1e-5), "big mismatch"

    # 3) mask=None path.
    out_nm = jax.block_until_ready(
        feedforward_pallas(x, None, w1, b1, w2, b2, in_dim))
    ref_nm = _ref_forward(x, None, w1, b1, w2, b2, in_dim)
    assert jnp.allclose(out_nm, ref_nm, atol=1e-5, rtol=1e-5), "no-mask mismatch"

    # 4) Row count not divisible by the pack factor (exercises pad + slice).
    x_odd = jax.random.normal(km2, (3, 7, feat), dtype=jnp.float32)
    out_odd = jax.block_until_ready(
        feedforward_pallas(x_odd, None, w1, b1, w2, b2, in_dim))
    ref_odd = _ref_forward(x_odd, None, w1, b1, w2, b2, in_dim)
    assert jnp.allclose(out_odd, ref_odd, atol=1e-5, rtol=1e-5), "odd mismatch"

    print("KERNEL_OK")
</pallas_src>

<mosaic_0001>
module attributes {stable_mosaic.version = 11 : i64} {
  func.func @_ff_kernel(%arg0: i32, %arg1: memref<4x96xf32, #tpu.memory_space<vmem>>, %arg2: memref<4x96xi8, #tpu.memory_space<vmem>>, %arg3: memref<96x128xf32, #tpu.memory_space<vmem>>, %arg4: memref<1x128xf32, #tpu.memory_space<vmem>>, %arg5: memref<128x128xf32, #tpu.memory_space<vmem>>, %arg6: memref<1x128xf32, #tpu.memory_space<vmem>>, %arg7: memref<4x128xf32, #tpu.memory_space<vmem>>) attributes {dimension_semantics = [#tpu.dimension_semantics<parallel>], iteration_bounds = array<i64: 1>, scalar_prefetch = 0 : i64, scratch_operands = 0 : i64, tpu.core_type = #tpu.core_type<tc>, window_params = [{transform_indices = @transform_0, window_bounds = array<i64: 4, 96>}, {transform_indices = @transform_1, window_bounds = array<i64: 4, 96>}, {pipeline_mode = #tpu.pipeline_mode<synchronous>, transform_indices = @transform_2, window_bounds = array<i64: 96, 128>}, {pipeline_mode = #tpu.pipeline_mode<synchronous>, transform_indices = @transform_3, window_bounds = array<i64: 1, 128>}, {pipeline_mode = #tpu.pipeline_mode<synchronous>, transform_indices = @transform_4, window_bounds = array<i64: 128, 128>}, {pipeline_mode = #tpu.pipeline_mode<synchronous>, transform_indices = @transform_5, window_bounds = array<i64: 1, 128>}, {transform_indices = @transform_6, window_bounds = array<i64: 4, 128>}]} {
    %c0 = arith.constant 0 : index
    %c0_0 = arith.constant 0 : index
    %0 = vector.load %arg1[%c0, %c0_0] : memref<4x96xf32, #tpu.memory_space<vmem>>, vector<4x96xf32>
    %c0_1 = arith.constant 0 : index
    %c0_2 = arith.constant 0 : index
    %1 = vector.load %arg2[%c0_1, %c0_2] : memref<4x96xi8, #tpu.memory_space<vmem>>, vector<4x96xi8>
    %c0_i8 = arith.constant 0 : i8
    %2 = vector.broadcast %c0_i8 : i8 to vector<4x96xi8>
    %3 = arith.cmpi ne, %1, %2 : vector<4x96xi8>
    %4 = arith.cmpf one, %0, %0 : vector<4x96xf32>
    %cst = arith.constant dense<true> : vector<4x96xi1>
    %5 = arith.xori %4, %cst : vector<4x96xi1>
    %6 = arith.andi %3, %5 : vector<4x96xi1>
    %cst_3 = arith.constant 0.000000e+00 : f32
    %7 = vector.broadcast %cst_3 : f32 to vector<4x96xf32>
    %8 = arith.select %6, %0, %7 : vector<4x96xi1>, vector<4x96xf32>
    %c0_4 = arith.constant 0 : index
    %c0_5 = arith.constant 0 : index
    %9 = vector.load %arg3[%c0_4, %c0_5] : memref<96x128xf32, #tpu.memory_space<vmem>>, vector<96x128xf32>
    %cst_6 = arith.constant dense<0.000000e+00> : vector<4x128xf32>
    %10 = tpu.matmul %8, %9, %cst_6 {dimension_numbers = #tpu.dot_dimension_numbers<[1], [0], [0], [1], [0, 0, 1, 1], [], []>} : vector<4x96xf32>, vector<96x128xf32>, vector<4x128xf32> -> vector<4x128xf32>
    %c0_7 = arith.constant 0 : index
    %c0_8 = arith.constant 0 : index
    %11 = vector.load %arg4[%c0_7, %c0_8] : memref<1x128xf32, #tpu.memory_space<vmem>>, vector<1x128xf32>
    %12 = vector.broadcast %11 : vector<1x128xf32> to vector<4x128xf32>
    %13 = arith.addf %10, %12 : vector<4x128xf32>
    %cst_9 = arith.constant 0.000000e+00 : f32
    %14 = vector.broadcast %cst_9 : f32 to vector<4x128xf32>
    %15 = arith.maximumf %13, %14 : vector<4x128xf32>
    %c0_10 = arith.constant 0 : index
    %c0_11 = arith.constant 0 : index
    %16 = vector.load %arg5[%c0_10, %c0_11] : memref<128x128xf32, #tpu.memory_space<vmem>>, vector<128x128xf32>
    %cst_12 = arith.constant dense<0.000000e+00> : vector<4x128xf32>
    %17 = tpu.matmul %15, %16, %cst_12 {dimension_numbers = #tpu.dot_dimension_numbers<[1], [0], [0], [1], [0, 0, 1, 1], [], []>} : vector<4x128xf32>, vector<128x128xf32>, vector<4x128xf32> -> vector<4x128xf32>
    %c0_13 = arith.constant 0 : index
    %c0_14 = arith.constant 0 : index
    %18 = vector.load %arg6[%c0_13, %c0_14] : memref<1x128xf32, #tpu.memory_space<vmem>>, vector<1x128xf32>
    %19 = vector.broadcast %18 : vector<1x128xf32> to vector<4x128xf32>
    %20 = arith.addf %17, %19 : vector<4x128xf32>
    %c0_15 = arith.constant 0 : index
    %c0_16 = arith.constant 0 : index
    %21 = vector.load %arg7[%c0_15, %c0_16] : memref<4x128xf32, #tpu.memory_space<vmem>>, vector<4x128xf32>
    tpu.vector_store %arg7[%c0_15, %c0_16], %20 {strides = array<i32>} : memref<4x128xf32, #tpu.memory_space<vmem>>, vector<4x128xf32>,
    return
  }
  func.func @transform_0(%arg0: i32) -> (i32, i32) {
    %c0_i32 = arith.constant 0 : i32
    %c0_i32_0 = arith.constant 0 : i32
    return %arg0, %c0_i32 : i32, i32
  }
  func.func @transform_1(%arg0: i32) -> (i32, i32) {
    %c0_i32 = arith.constant 0 : i32
    %c0_i32_0 = arith.constant 0 : i32
    return %arg0, %c0_i32 : i32, i32
  }
  func.func @transform_2(%arg0: i32) -> (i32, i32) {
    %c0_i32 = arith.constant 0 : i32
    %c0_i32_0 = arith.constant 0 : i32
    %c0_i32_1 = arith.constant 0 : i32
    return %c0_i32, %c0_i32_0 : i32, i32
  }
  func.func @transform_3(%arg0: i32) -> (i32, i32) {
    %c0_i32 = arith.constant 0 : i32
    %c0_i32_0 = arith.constant 0 : i32
    %c0_i32_1 = arith.constant 0 : i32
    return %c0_i32, %c0_i32_0 : i32, i32
  }
  func.func @transform_4(%arg0: i32) -> (i32, i32) {
    %c0_i32 = arith.constant 0 : i32
    %c0_i32_0 = arith.constant 0 : i32
    %c0_i32_1 = arith.constant 0 : i32
    return %c0_i32, %c0_i32_0 : i32, i32
  }
  func.func @transform_5(%arg0: i32) -> (i32, i32) {
    %c0_i32 = arith.constant 0 : i32
    %c0_i32_0 = arith.constant 0 : i32
    %c0_i32_1 = arith.constant 0 : i32
    return %c0_i32, %c0_i32_0 : i32, i32
  }
  func.func @transform_6(%arg0: i32) -> (i32, i32) {
    %c0_i32 = arith.constant 0 : i32
    %c0_i32_0 = arith.constant 0 : i32
    return %arg0, %c0_i32 : i32, i32
  }
}

</mosaic_0001>

<llo_original>
// kernel: tpu_custom_call.1
$region0: #{tpu_custom_call.1}
  #allocation0 [shape = 'u32[]', space=smem, size = 0x4, offset = 0x4, fixed_abs, tag = 'smem constant byte address 0x4 - core index']
  #allocation1 [shape = 'u32[144,128]{1,0:T(1,128)}', space=vmem, size = 0x12000, scoped, tag = 'internal scratch']
  %s0 = inlined_call_operand.hbm [shape: f32[4,96], index: 0, kind: input, shape index: {}]
  %s1 = inlined_call_operand.vmem [shape: s8[4,96], index: 1, kind: input, shape index: {}]
  %s2 = inlined_call_operand.hbm [shape: f32[96,128], index: 2, kind: input, shape index: {}]
  %s3 = inlined_call_operand.vmem [shape: f32[1,128], index: 3, kind: input, shape index: {}]
  %s4 = inlined_call_operand.hbm [shape: f32[128,128], index: 4, kind: input, shape index: {}]
  %s5 = inlined_call_operand.vmem [shape: f32[1,128], index: 5, kind: input, shape index: {}]
  %s6 = inlined_call_operand.hbm [shape: f32[4,128], index: 6, kind: output, shape index: {}]
  %s7 = sld [smem:[#allocation0]]
  $region46: #{tpu_custom_call.1} parent=0
    _
  %s9 = ssub.s32 1, %s7
  %s10 = scalar_select 0, %s9, %s7
  $region1: #{tpu_custom_call.1} parent=0
    #allocation2 [shape = 'u8[2048]{0}', space=vmem, size = 0x800, scoped, tag = 'input window, operand 0, single buffered']
    #allocation3 [shape = 's32[1]{0}', space=sflag, size = 0x4, scoped, tag = 'scoped memory for tpu_custom_call.1']
    #allocation4 [shape = 's32[1]{0}', space=sflag, size = 0x4, scoped, tag = 'scoped memory for tpu_custom_call.1']
    #allocation5 [shape = 'u8[49152]{0}', space=vmem, size = 0xc000, scoped, tag = 'input window, operand 2, single buffered']
    #allocation6 [shape = 's32[1]{0}', space=sflag, size = 0x4, scoped, tag = 'scoped memory for tpu_custom_call.1']
    #allocation7 [shape = 'u8[65536]{0}', space=vmem, size = 0x10000, scoped, tag = 'input window, operand 4, single buffered']
    #allocation8 [shape = 'u8[2048]{0}', space=vmem, size = 0x800, scoped, tag = 'output window, operand 0, single buffered']
    %11 = vsyncpa [#allocation3], 0
    %12 = vsyncpa [#allocation6], 0
    %13 = vsyncpa [#allocation4], 0
    // Predicated region
    $region2: #{tpu_custom_call.1} parent=1 // pred_check
      _
    $region3: #{tpu_custom_call.1} parent=1 // pred_check_branch
      %15 = sbr.rel (0) target = $region5
    $region4: #{tpu_custom_call.1} parent=1 // pred_region
      %s17 = ssub.s32 64, 64
      %18 = vsyncadd [#allocation3], %s17
      %s20 = sshll.u32 [#allocation2], 4
      %s21 = int_to_ptr.vmem [resolvable:$true] %s20
      %23 = dma.hbm_to_vmem [thread:$0]  %s0, 64, %s21, [#allocation3]
    $region5: #{tpu_custom_call.1} parent=1 // pred_fallthru
      _
    // Predicated region
    $region6: #{tpu_custom_call.1} parent=1 // pred_check
      _
    $region7: #{tpu_custom_call.1} parent=1 // pred_check_branch
      %25 = sbr.rel (0) target = $region9
    $region8: #{tpu_custom_call.1} parent=1 // pred_region
      _
    $region9: #{tpu_custom_call.1} parent=1 // pred_fallthru
      _
    // Predicated region
    $region10: #{tpu_custom_call.1} parent=1 // pred_check
      _
    $region11: #{tpu_custom_call.1} parent=1 // pred_check_branch
      %27 = sbr.rel (0) target = $region13
    $region12: #{tpu_custom_call.1} parent=1 // pred_region
      %s29 = ssub.s32 1536, 1536
      %30 = vsyncadd [#allocation6], %s29
      %s31 = sshll.u32 [#allocation5], 4
      %s32 = int_to_ptr.vmem [resolvable:$true] %s31
      %37 = dma.hbm_to_vmem [thread:$0]  %s2, 1536, %s32, [#allocation6], 128, 128, 8
    $region13: #{tpu_custom_call.1} parent=1 // pred_fallthru
      _
    // Predicated region
    $region14: #{tpu_custom_call.1} parent=1 // pred_check
      _
    $region15: #{tpu_custom_call.1} parent=1 // pred_check_branch
      %39 = sbr.rel (0) target = $region17
    $region16: #{tpu_custom_call.1} parent=1 // pred_region
      _
    $region17: #{tpu_custom_call.1} parent=1 // pred_fallthru
      _
    // Predicated region
    $region18: #{tpu_custom_call.1} parent=1 // pred_check
      _
    $region19: #{tpu_custom_call.1} parent=1 // pred_check_branch
      %41 = sbr.rel (0) target = $region21
    $region20: #{tpu_custom_call.1} parent=1 // pred_region
      %s43 = ssub.s32 2048, 2048
      %44 = vsyncadd [#allocation6], %s43
      %s45 = sshll.u32 [#allocation7], 4
      %s46 = int_to_ptr.vmem [resolvable:$true] %s45
      %51 = dma.hbm_to_vmem [thread:$0]  %s4, 2048, %s46, [#allocation6], 128, 128, 8
    $region21: #{tpu_custom_call.1} parent=1 // pred_fallthru
      _
    // Predicated region
    $region22: #{tpu_custom_call.1} parent=1 // pred_check
      _
    $region23: #{tpu_custom_call.1} parent=1 // pred_check_branch
      %53 = sbr.rel (0) target = $region25
    $region24: #{tpu_custom_call.1} parent=1 // pred_region
      _
    $region25: #{tpu_custom_call.1} parent=1 // pred_fallthru
      _
    // Predicated region
    $region26: #{tpu_custom_call.1} parent=1 // pred_check
      _
    $region27: #{tpu_custom_call.1} parent=1 // pred_check_branch
      %55 = sbr.rel (0) target = $region29
    $region28: #{tpu_custom_call.1} parent=1 // pred_region
      %56 = dma.done [#allocation3], 64
    $region29: #{tpu_custom_call.1} parent=1 // pred_fallthru
      _
    // Predicated region
    $region30: #{tpu_custom_call.1} parent=1 // pred_check
      _
    $region31: #{tpu_custom_call.1} parent=1 // pred_check_branch
      %58 = sbr.rel (0) target = $region33
    $region32: #{tpu_custom_call.1} parent=1 // pred_region
      %59 = dma.done [#allocation6], 1536
    $region33: #{tpu_custom_call.1} parent=1 // pred_fallthru
      _
    // Predicated region
    $region34: #{tpu_custom_call.1} parent=1 // pred_check
      _
    $region35: #{tpu_custom_call.1} parent=1 // pred_check_branch
      %61 = sbr.rel (0) target = $region37
    $region36: #{tpu_custom_call.1} parent=1 // pred_region
      %62 = dma.done [#allocation6], 2048
    $region37: #{tpu_custom_call.1} parent=1 // pred_fallthru
      _
    %v65 = vld [vmem:[#allocation2] sm:$0xf]
    %v66 = vld [vmem:[%s1] sm:$0x1]
    %vm67 = vnez %v66
    %vm68 = vcmp.ne.f32.partialorder %v65, %v65
    %vm69 = vmxor %vm68, 1
    %v70 = vsel %vm69, 1, 0
    %v71 = vpack.c.b16 %v70, %v70
    %v72 = vpack.c.b8 %v71, %v71
    %vm73 = vnez %v72
    %vm74 = vmand %vm67, %vm73
    %v75 = vsel %vm74, 16843009, 0
    %v76 = vunpack.c.0.s8 %v75
    %vm77 = vcmp.ne.s32.totalorder %v76, 0
    %v78 = vsel %vm77, %v65, 0.0
    %v79 = vld [vmem:[#allocation5] sm:$0xff]
    %v80 = vld [vmem:[#allocation5 + $0x8] sm:$0xff]
    %v81 = vld [vmem:[#allocation5 + $0x10] sm:$0xff]
    %v82 = vld [vmem:[#allocation5 + $0x18] sm:$0xff]
    %v83 = vld [vmem:[#allocation5 + $0x20] sm:$0xff]
    %v84 = vld [vmem:[#allocation5 + $0x28] sm:$0xff]
    %v85 = vld [vmem:[#allocation5 + $0x30] sm:$0xff]
    %v86 = vld [vmem:[#allocation5 + $0x38] sm:$0xff]
    %v87 = vld [vmem:[#allocation5 + $0x40] sm:$0xff]
    %v88 = vld [vmem:[#allocation5 + $0x48] sm:$0xff]
    %v89 = vld [vmem:[#allocation5 + $0x50] sm:$0xff]
    %v90 = vld [vmem:[#allocation5 + $0x58] sm:$0xff]
    %v91 = vld [vmem:[%s3] sm:$0x1]
    %v93 = vlaneseq
    %v94 = vshrl.u32 %v93, 7
    %v95 = vsub.s32 0, %v94
    %v96 = vrot.slane %v91, %v95
    %vm98 = vcmask 785408
    %v100 = vsel %vm98, %v78, 0
    %102 = vmatprep.subr.mxu0 0.0
    %103 = vmatpush1.msra.mxu0 0.0
    %104 = vmatprep.subr.mxu0 0.0
    %105 = vmatpush1.msra.mxu0 0.0
    %106 = vmatprep.subr.mxu0 0.0
    %107 = vmatpush1.msra.mxu0 0.0
    %108 = vmatprep.subr.mxu0 0.0
    %109 = vmatpush1.msra.mxu0 0.0
    %110 = vmatprep.subr.mxu0 0.0
    %111 = vmatpush1.msra.mxu0 %v90
    %112 = vmatprep.subr.mxu0 0.0
    %113 = vmatpush1.msra.mxu0 %v89
    %114 = vmatprep.subr.mxu0 0.0
    %115 = vmatpush1.msra.mxu0 %v88
    %116 = vmatprep.subr.mxu0 0.0
    %117 = vmatpush1.msra.mxu0 %v87
    %118 = vmatprep.subr.mxu0 0.0
    %119 = vmatpush1.msra.mxu0 %v86
    %120 = vmatprep.subr.mxu0 0.0
    %121 = vmatpush1.msra.mxu0 %v85
    %122 = vmatprep.subr.mxu0 0.0
    %123 = vmatpush1.msra.mxu0 %v84
    %124 = vmatprep.subr.mxu0 0.0
    %125 = vmatpush1.msra.mxu0 %v83
    %126 = vmatprep.subr.mxu0 0.0
    %127 = vmatpush1.msra.mxu0 %v82
    %128 = vmatprep.subr.mxu0 0.0
    %129 = vmatpush1.msra.mxu0 %v81
    %130 = vmatprep.subr.mxu0 0.0
    %131 = vmatpush1.msra.mxu0 %v80
    %132 = vmatprep.subr.mxu0 0.0
    %133 = vmatpush1.msra.mxu0 %v79
    %134 = vmatprep.subr.mxu0 0.0
    %135 = vmatpush2.msra.mxu0 0.0
    %136 = vmatprep.subr.mxu0 0.0
    %137 = vmatpush2.msra.mxu0 0.0
    %138 = vmatprep.subr.mxu0 0.0
    %139 = vmatpush2.msra.mxu0 0.0
    %140 = vmatprep.subr.mxu0 0.0
    %141 = vmatpush2.msra.mxu0 0.0
    %142 = vmatprep.subr.mxu0 0.0
    %143 = vmatpush2.msra.mxu0 0.0
    %144 = vmatprep.subr.mxu0 0.0
    %145 = vmatpush2.msra.mxu0 0.0
    %146 = vmatprep.subr.mxu0 0.0
    %147 = vmatpush2.msra.mxu0 0.0
    %148 = vmatprep.subr.mxu0 0.0
    %149 = vmatpush2.msra.mxu0 0.0
    %150 = vmatprep.subr.mxu0 0.0
    %151 = vmatpush2.msra.mxu0 0.0
    %152 = vmatprep.subr.mxu0 0.0
    %153 = vmatpush2.msra.mxu0 0.0
    %154 = vmatprep.subr.mxu0 0.0
    %155 = vmatpush2.msra.mxu0 0.0
    %156 = vmatprep.subr.mxu0 0.0
    %157 = vmatpush2.msra.mxu0 0.0
    %158 = vmatprep.subr.mxu0 0.0
    %159 = vmatpush2.msra.mxu0 0.0
    %160 = vmatprep.subr.mxu0 0.0
    %161 = vmatpush2.msra.mxu0 0.0
    %162 = vmatprep.subr.mxu0 0.0
    %163 = vmatpush2.msra.mxu0 0.0
    %164 = vmatprep.subr.mxu0 0.0
    %165 = vmatpush2.msra.mxu0 0.0
    %166 = vmatprep.mubr.f32.mxu0 0.0
    %167 = vmatmul.mubr.f32.gmra.mxu0 %v100
    %v168 = vpop.f32.mrf.mxu0
    %v169 = vadd.f32 %v96, %v168
    %v170 = vpop.f32.mrf.mxu0
    %171 = vdwg.mxu0
    %v172 = vmax.f32 %v169, 0.0
    %v173 = vld [vmem:[#allocation7] sm:$0xff]
    %v174 = vld [vmem:[#allocation7 + $0x8] sm:$0xff]
    %v175 = vld [vmem:[#allocation7 + $0x10] sm:$0xff]
    %v176 = vld [vmem:[#allocation7 + $0x18] sm:$0xff]
    %v177 = vld [vmem:[#allocation7 + $0x20] sm:$0xff]
    %v178 = vld [vmem:[#allocation7 + $0x28] sm:$0xff]
    %v179 = vld [vmem:[#allocation7 + $0x30] sm:$0xff]
    %v180 = vld [vmem:[#allocation7 + $0x38] sm:$0xff]
    %v181 = vld [vmem:[#allocation7 + $0x40] sm:$0xff]
    %v182 = vld [vmem:[#allocation7 + $0x48] sm:$0xff]
    %v183 = vld [vmem:[#allocation7 + $0x50] sm:$0xff]
    %v184 = vld [vmem:[#allocation7 + $0x58] sm:$0xff]
    %v185 = vld [vmem:[#allocation7 + $0x60] sm:$0xff]
    %v186 = vld [vmem:[#allocation7 + $0x68] sm:$0xff]
    %v187 = vld [vmem:[#allocation7 + $0x70] sm:$0xff]
    %v188 = vld [vmem:[#allocation7 + $0x78] sm:$0xff]
    %v189 = vld [vmem:[%s5] sm:$0x1]
    %v191 = vlaneseq
    %v192 = vshrl.u32 %v191, 7
    %v193 = vsub.s32 0, %v192
    %v194 = vrot.slane %v189, %v193
    %196 = vmatprep.subr.mxu0 0.0
    %197 = vmatpush1.msra.mxu0 %v188
    %198 = vmatprep.subr.mxu0 0.0
    %199 = vmatpush1.msra.mxu0 %v187
    %200 = vmatprep.subr.mxu0 0.0
    %201 = vmatpush1.msra.mxu0 %v186
    %202 = vmatprep.subr.mxu0 0.0
    %203 = vmatpush1.msra.mxu0 %v185
    %204 = vmatprep.subr.mxu0 0.0
    %205 = vmatpush1.msra.mxu0 %v184
    %206 = vmatprep.subr.mxu0 0.0
    %207 = vmatpush1.msra.mxu0 %v183
    %208 = vmatprep.subr.mxu0 0.0
    %209 = vmatpush1.msra.mxu0 %v182
    %210 = vmatprep.subr.mxu0 0.0
    %211 = vmatpush1.msra.mxu0 %v181
    %212 = vmatprep.subr.mxu0 0.0
    %213 = vmatpush1.msra.mxu0 %v180
    %214 = vmatprep.subr.mxu0 0.0
    %215 = vmatpush1.msra.mxu0 %v179
    %216 = vmatprep.subr.mxu0 0.0
    %217 = vmatpush1.msra.mxu0 %v178
    %218 = vmatprep.subr.mxu0 0.0
    %219 = vmatpush1.msra.mxu0 %v177
    %220 = vmatprep.subr.mxu0 0.0
    %221 = vmatpush1.msra.mxu0 %v176
    %222 = vmatprep.subr.mxu0 0.0
    %223 = vmatpush1.msra.mxu0 %v175
    %224 = vmatprep.subr.mxu0 0.0
    %225 = vmatpush1.msra.mxu0 %v174
    %226 = vmatprep.subr.mxu0 0.0
    %227 = vmatpush1.msra.mxu0 %v173
    %228 = vmatprep.subr.mxu0 0.0
    %229 = vmatpush2.msra.mxu0 0.0
    %230 = vmatprep.subr.mxu0 0.0
    %231 = vmatpush2.msra.mxu0 0.0
    %232 = vmatprep.subr.mxu0 0.0
    %233 = vmatpush2.msra.mxu0 0.0
    %234 = vmatprep.subr.mxu0 0.0
    %235 = vmatpush2.msra.mxu0 0.0
    %236 = vmatprep.subr.mxu0 0.0
    %237 = vmatpush2.msra.mxu0 0.0
    %238 = vmatprep.subr.mxu0 0.0
    %239 = vmatpush2.msra.mxu0 0.0
    %240 = vmatprep.subr.mxu0 0.0
    %241 = vmatpush2.msra.mxu0 0.0
    %242 = vmatprep.subr.mxu0 0.0
    %243 = vmatpush2.msra.mxu0 0.0
    %244 = vmatprep.subr.mxu0 0.0
    %245 = vmatpush2.msra.mxu0 0.0
    %246 = vmatprep.subr.mxu0 0.0
    %247 = vmatpush2.msra.mxu0 0.0
    %248 = vmatprep.subr.mxu0 0.0
    %249 = vmatpush2.msra.mxu0 0.0
    %250 = vmatprep.subr.mxu0 0.0
    %251 = vmatpush2.msra.mxu0 0.0
    %252 = vmatprep.subr.mxu0 0.0
    %253 = vmatpush2.msra.mxu0 0.0
    %254 = vmatprep.subr.mxu0 0.0
    %255 = vmatpush2.msra.mxu0 0.0
    %256 = vmatprep.subr.mxu0 0.0
    %257 = vmatpush2.msra.mxu0 0.0
    %258 = vmatprep.subr.mxu0 0.0
    %259 = vmatpush2.msra.mxu0 0.0
    %260 = vmatprep.mubr.f32.mxu0 0.0
    %261 = vmatmul.mubr.f32.gmra.mxu0 %v172
    %v262 = vpop.f32.mrf.mxu0
    %v263 = vadd.f32 %v194, %v262
    %v264 = vpop.f32.mrf.mxu0
    %265 = vdwg.mxu0
    %266 = vst [vmem:[#allocation8] sm:$0xf] %v263
    // Predicated region
    $region38: #{tpu_custom_call.1} parent=1 // pred_check
      _
    $region39: #{tpu_custom_call.1} parent=1 // pred_check_branch
      %268 = sbr.rel (0) target = $region41
    $region40: #{tpu_custom_call.1} parent=1 // pred_region
      %s270 = ssub.s32 64, 64
      %271 = vsyncadd [#allocation4], %s270
      %s273 = sshll.u32 [#allocation8], 4
      %s274 = int_to_ptr.vmem [resolvable:$true] %s273
      %276 = dma.vmem_to_hbm [thread:$0]  %s274, 64, %s6, [#allocation4]
    $region41: #{tpu_custom_call.1} parent=1 // pred_fallthru
      _
    // Predicated region
    $region42: #{tpu_custom_call.1} parent=1 // pred_check
      _
    $region43: #{tpu_custom_call.1} parent=1 // pred_check_branch
      %278 = sbr.rel (0) target = $region45
    $region44: #{tpu_custom_call.1} parent=1 // pred_region
      %279 = dma.done [#allocation4], 64
    $region45: #{tpu_custom_call.1} parent=1 // pred_fallthru
      _
    %280 = vsyncpa [#allocation3], 1
    %281 = vsyncpa [#allocation6], 1
    %282 = vsyncpa [#allocation4], 1

</llo_original>
